<compile_context>
chip_gen: v7x
topology: tpu7x:2x2x1
jax: 0.10.0
libtpu: 0.0.40
codegen_flags: <defaults>
</compile_context>

<pallas_src>
import math
import functools

import jax
import jax.numpy as jnp
from jax import lax
from jax.experimental import pallas as pl
from jax.experimental.pallas import tpu as pltpu

LN_EPS = 1e-5  # PyTorch nn.LayerNorm default


def _round_up(x, m):
    return ((x + m - 1) // m) * m


# ----------------------------------------------------------------------------
# Fused kernel: in-VMEM row gather + row-wise LayerNorm (common vs ocr params
# selected per row) + add of the pre-normalized pos+type tile.
# ----------------------------------------------------------------------------
def _make_prev_emb_kernel(tile, vocab, num_ocr, padded_seq):
    def kernel(inds_smem, common_ref, ocr_ref, pos_ref, g_ref, b_ref, out_ref):
        b = pl.program_id(0)
        t = pl.program_id(1)
        base = b * padded_seq + t * tile

        # LN affine rows, loaded once per step (tiny).
        g_common = g_ref[0:1, :]
        g_ocr = g_ref[1:2, :]
        b_common = b_ref[0:1, :]
        b_ocr = b_ref[1:2, :]

        rows, gs, bs = [], [], []
        for r in range(tile):                          # static unroll
            idx = inds_smem[base + r]                  # scalar from SMEM
            take_ocr = idx >= vocab
            ci = jnp.clip(idx, 0, vocab - 1)
            oi = jnp.clip(idx - vocab, 0, num_ocr - 1)
            row_c = common_ref[pl.ds(ci, 1), :]        # (1, H) dynamic VMEM load
            row_o = ocr_ref[pl.ds(oi, 1), :]           # (1, H)
            rows.append(jnp.where(take_ocr, row_o, row_c))
            gs.append(jnp.where(take_ocr, g_ocr, g_common))
            bs.append(jnp.where(take_ocr, b_ocr, b_common))

        # Assemble the whole tile in vregs (no scratch round-trip).
        x = jnp.concatenate(rows, axis=0).astype(jnp.float32)    # (tile, H)
        g = jnp.concatenate(gs, axis=0).astype(jnp.float32)
        be = jnp.concatenate(bs, axis=0).astype(jnp.float32)

        # Row-wise LayerNorm of the gathered rows (exact: LN is per-row).
        mu = jnp.mean(x, axis=-1, keepdims=True)
        var = jnp.mean((x - mu) ** 2, axis=-1, keepdims=True)    # biased, like torch
        xn = (x - mu) * lax.rsqrt(var + LN_EPS) * g + be

        # pos+type was LayerNorm'd in the wrapper; dropout == identity (eval).
        out_ref[...] = (xn + pos_ref[...].astype(jnp.float32)).astype(out_ref.dtype)

    return kernel


def _layer_norm(x, g, b):
    x = x.astype(jnp.float32)
    mu = x.mean(-1, keepdims=True)
    var = ((x - mu) ** 2).mean(-1, keepdims=True)
    return (x - mu) * lax.rsqrt(var + LN_EPS) * g + b


# ----------------------------------------------------------------------------
# PrevEmbedding forward (single fused Pallas call).
# ----------------------------------------------------------------------------
def prev_embedding_forward(params, common_voc_embedding, ocr_embedding, prev_inds,
                           *, max_tile=64):
    batch, seq = prev_inds.shape
    vocab, h = common_voc_embedding.shape
    num_ocr = ocr_embedding.shape[1]

    # Sequence tile: multiple of 8, up to max_tile, amortizes per-step overhead.
    tile = max(8, min(_round_up(max_tile, 8), _round_up(seq, 8)))
    padded_seq = _round_up(seq, tile)

    inds = prev_inds.astype(jnp.int32)
    if padded_seq != seq:
        inds = jnp.pad(inds, ((0, 0), (0, padded_seq - seq)))
    inds_flat = inds.reshape(-1)                       # 1-D -> tight SMEM padding

    # LN(pos + type) is batch-independent: compute ONCE here (was recomputed
    # for every (b, t) grid step in the previous kernel).
    position_ids = jnp.arange(seq, dtype=jnp.int32)
    type_ids = (position_ids >= vocab).astype(jnp.int32)   # faithful to torch .ge(vocab_size)
    pos_raw = params["pos_emb"][position_ids] + params["type_emb"][type_ids]
    pos_type = _layer_norm(pos_raw, params["emb_ln_g"], params["emb_ln_b"])      # (S, H) f32
    if padded_seq != seq:
        pos_type = jnp.pad(pos_type, ((0, padded_seq - seq), (0, 0)))

    gammas = jnp.stack([params["cv_ln_g"], params["ocr_ln_g"]]).astype(jnp.float32)  # (2, H)
    betas = jnp.stack([params["cv_ln_b"], params["ocr_ln_b"]]).astype(jnp.float32)   # (2, H)

    # VMEM budget: resident tables (x2 for buffering slack) + streamed tiles.
    itemsize = jnp.dtype(common_voc_embedding.dtype).itemsize
    resident = 2 * (vocab * h + num_ocr * h) * itemsize
    streamed = 2 * 2 * tile * h * 4 + 4 * 2 * h * 4
    vmem_limit = int(min(max(resident + streamed + (2 << 20), 16 << 20), 48 << 20))

    grid = (batch, padded_seq // tile)

    in_specs = [
        pl.BlockSpec((vocab, h), lambda b, t, _inds: (0, 0)),             # common table: VMEM-resident
        pl.BlockSpec((None, num_ocr, h), lambda b, t, _inds: (b, 0, 0)),  # per-batch OCR slice: resident
        pl.BlockSpec((tile, h), lambda b, t, _inds: (t, 0)),              # normalized pos+type tile
        pl.BlockSpec((2, h), lambda b, t, _inds: (0, 0)),                 # LN gammas [common, ocr]
        pl.BlockSpec((2, h), lambda b, t, _inds: (0, 0)),                 # LN betas  [common, ocr]
    ]
    grid_spec = pltpu.PrefetchScalarGridSpec(
        num_scalar_prefetch=1,
        grid=grid,
        in_specs=in_specs,
        out_specs=pl.BlockSpec((None, tile, h), lambda b, t, _inds: (b, t, 0)),
    )

    kernel = _make_prev_emb_kernel(tile, vocab, num_ocr, padded_seq)
    out = pl.pallas_call(
        kernel,
        out_shape=jax.ShapeDtypeStruct((batch, padded_seq, h), common_voc_embedding.dtype),
        grid_spec=grid_spec,
        compiler_params=pltpu.CompilerParams(
            dimension_semantics=("parallel", "parallel"),
            vmem_limit_bytes=vmem_limit),
    )(inds_flat, common_voc_embedding, ocr_embedding, pos_type, gammas, betas)

    return out[:, :seq, :]


# ----------------------------------------------------------------------------
# Pure-JAX reference for verification (mirrors the torch module).
# ----------------------------------------------------------------------------
def prev_embedding_ref(params, common, ocr, prev_inds):
    batch, seq = prev_inds.shape
    vocab, h = common.shape
    common_n = _layer_norm(common, params["cv_ln_g"], params["cv_ln_b"])
    ocr_n = _layer_norm(ocr, params["ocr_ln_g"], params["ocr_ln_b"])
    table = jnp.concatenate(
        [jnp.broadcast_to(common_n[None], (batch, vocab, h)), ocr_n], axis=1)
    gathered = jnp.take_along_axis(table, prev_inds[..., None], axis=1)
    pos_ids = jnp.arange(seq)
    pos = params["pos_emb"][pos_ids]
    typ = params["type_emb"][(pos_ids >= vocab).astype(jnp.int32)]
    pos_type = _layer_norm(pos + typ, params["emb_ln_g"], params["emb_ln_b"])
    return gathered + pos_type[None]


# ----------------------------------------------------------------------------
# Deterministic parameter init (shapes from PrevEmbedding.__init__).
# ----------------------------------------------------------------------------
def init_params(key, hidden_size, dec_length):
    keys = jax.random.split(key, 8)

    # Sinusoidal positional embedding (init_pe_weights()).
    pos = jnp.arange(dec_length, dtype=jnp.float32)[:, None]
    div = jnp.exp(jnp.arange(0, hidden_size, 2, dtype=jnp.float32)
                  * (-math.log(10000.0) / hidden_size))
    pe = jnp.zeros((dec_length, hidden_size), jnp.float32)
    pe = pe.at[:, 0::2].set(jnp.sin(pos * div))
    pe = pe.at[:, 1::2].set(jnp.cos(pos * div))

    return {
        "pos_emb": pe,                                                     # (DEC_LENGTH, H)
        "type_emb": 0.02 * jax.random.normal(keys[0], (2, hidden_size), jnp.float32),
        "cv_ln_g": 1.0 + 0.1 * jax.random.normal(keys[1], (hidden_size,), jnp.float32),
        "cv_ln_b": 0.1 * jax.random.normal(keys[2], (hidden_size,), jnp.float32),
        "ocr_ln_g": 1.0 + 0.1 * jax.random.normal(keys[3], (hidden_size,), jnp.float32),
        "ocr_ln_b": 0.1 * jax.random.normal(keys[4], (hidden_size,), jnp.float32),
        "emb_ln_g": 1.0 + 0.1 * jax.random.normal(keys[5], (hidden_size,), jnp.float32),
        "emb_ln_b": 0.1 * jax.random.normal(keys[6], (hidden_size,), jnp.float32),
    }


def _run_case(seed, batch, vocab, num_ocr, seq, hidden, dec_length):
    key = jax.random.PRNGKey(seed)
    kp, kc, ko, ki = jax.random.split(key, 4)

    params = init_params(kp, hidden, dec_length)
    common_voc_embedding = jax.random.normal(kc, (vocab, hidden), jnp.float32)
    ocr_embedding = jax.random.normal(ko, (batch, num_ocr, hidden), jnp.float32)
    prev_inds = jax.random.randint(ki, (batch, seq), 0, vocab + num_ocr, jnp.int32)

    fwd = jax.jit(functools.partial(prev_embedding_forward, params))
    out = jax.block_until_ready(fwd(common_voc_embedding, ocr_embedding, prev_inds))

    ref = prev_embedding_ref(params, common_voc_embedding, ocr_embedding, prev_inds)
    assert out.shape == (batch, seq, hidden)
    assert jnp.allclose(out, ref, atol=1e-4, rtol=1e-4), \
        f"max abs diff {jnp.max(jnp.abs(out - ref))}"


if __name__ == "__main__":
    # Small shapes consistent with the module.
    _run_case(0, batch=2, vocab=32, num_ocr=8, seq=8, hidden=128, dec_length=16)
    # Second case exercises sequence padding and the token-type-1 branch.
    _run_case(0, batch=2, vocab=16, num_ocr=4, seq=20, hidden=128, dec_length=32)

    # TODO(synk): nn.Dropout is identity at inference; training-mode dropout not implemented.
    print("KERNEL_OK")
</pallas_src>

<mosaic_0001>
module attributes {stable_mosaic.version = 11 : i64} {
  func.func @kernel(%arg0: i32, %arg1: i32, %arg2: memref<16xi32, #tpu.memory_space<smem>>, %arg3: memref<32x128xf32, #tpu.memory_space<vmem>>, %arg4: memref<1x8x128xf32, #tpu.memory_space<vmem>>, %arg5: memref<8x128xf32, #tpu.memory_space<vmem>>, %arg6: memref<2x128xf32, #tpu.memory_space<vmem>>, %arg7: memref<2x128xf32, #tpu.memory_space<vmem>>, %arg8: memref<1x8x128xf32, #tpu.memory_space<vmem>>) attributes {dimension_semantics = [#tpu.dimension_semantics<parallel>, #tpu.dimension_semantics<parallel>], iteration_bounds = array<i64: 2, 1>, scalar_prefetch = 1 : i64, scratch_operands = 0 : i64, tpu.core_type = #tpu.core_type<tc>, window_params = [{pipeline_mode = #tpu.pipeline_mode<synchronous>, transform_indices = @transform_0, window_bounds = array<i64: 32, 128>}, {transform_indices = @transform_1, window_bounds = array<i64: 1, 8, 128>}, {transform_indices = @transform_2, window_bounds = array<i64: 8, 128>}, {pipeline_mode = #tpu.pipeline_mode<synchronous>, transform_indices = @transform_3, window_bounds = array<i64: 2, 128>}, {pipeline_mode = #tpu.pipeline_mode<synchronous>, transform_indices = @transform_4, window_bounds = array<i64: 2, 128>}, {transform_indices = @transform_5, window_bounds = array<i64: 1, 8, 128>}]} {
    %c8_i32 = arith.constant 8 : i32
    %0 = arith.muli %arg0, %c8_i32 : i32
    %c8_i32_0 = arith.constant 8 : i32
    %1 = arith.muli %arg1, %c8_i32_0 : i32
    %2 = arith.addi %0, %1 : i32
    %c0 = arith.constant 0 : index
    %c0_1 = arith.constant 0 : index
    %3 = vector.load %arg6[%c0, %c0_1] : memref<2x128xf32, #tpu.memory_space<vmem>>, vector<1x128xf32>
    %c1 = arith.constant 1 : index
    %c0_2 = arith.constant 0 : index
    %4 = vector.load %arg6[%c1, %c0_2] : memref<2x128xf32, #tpu.memory_space<vmem>>, vector<1x128xf32>
    %c0_3 = arith.constant 0 : index
    %c0_4 = arith.constant 0 : index
    %5 = vector.load %arg7[%c0_3, %c0_4] : memref<2x128xf32, #tpu.memory_space<vmem>>, vector<1x128xf32>
    %c1_5 = arith.constant 1 : index
    %c0_6 = arith.constant 0 : index
    %6 = vector.load %arg7[%c1_5, %c0_6] : memref<2x128xf32, #tpu.memory_space<vmem>>, vector<1x128xf32>
    %c0_i32 = arith.constant 0 : i32
    %7 = arith.addi %2, %c0_i32 : i32
    %8 = arith.index_cast %7 : i32 to index
    %9 = memref.load %arg2[%8] : memref<16xi32, #tpu.memory_space<smem>>
    %c32_i32 = arith.constant 32 : i32
    %10 = arith.cmpi sge, %9, %c32_i32 : i32
    %c0_i32_7 = arith.constant 0 : i32
    %c31_i32 = arith.constant 31 : i32
    %11 = arith.maxsi %c0_i32_7, %9 : i32
    %12 = arith.minsi %c31_i32, %11 : i32
    %c32_i32_8 = arith.constant 32 : i32
    %13 = arith.subi %9, %c32_i32_8 : i32
    %c0_i32_9 = arith.constant 0 : i32
    %c7_i32 = arith.constant 7 : i32
    %14 = arith.maxsi %c0_i32_9, %13 : i32
    %15 = arith.minsi %c7_i32, %14 : i32
    %16 = arith.index_cast %12 : i32 to index
    %c0_10 = arith.constant 0 : index
    %17 = vector.load %arg3[%16, %c0_10] : memref<32x128xf32, #tpu.memory_space<vmem>>, vector<1x128xf32>
    %c0_11 = arith.constant 0 : index
    %18 = arith.index_cast %15 : i32 to index
    %c0_12 = arith.constant 0 : index
    %19 = vector.load %arg4[%c0_11, %18, %c0_12] : memref<1x8x128xf32, #tpu.memory_space<vmem>>, vector<1x1x128xf32>
    %20 = vector.shape_cast %19 : vector<1x1x128xf32> to vector<1x128xf32>
    %21 = arith.select %10, %20, %17 : vector<1x128xf32>
    %22 = arith.select %10, %4, %3 : vector<1x128xf32>
    %23 = arith.select %10, %6, %5 : vector<1x128xf32>
    %c1_i32 = arith.constant 1 : i32
    %24 = arith.addi %2, %c1_i32 : i32
    %25 = arith.index_cast %24 : i32 to index
    %26 = memref.load %arg2[%25] : memref<16xi32, #tpu.memory_space<smem>>
    %c32_i32_13 = arith.constant 32 : i32
    %27 = arith.cmpi sge, %26, %c32_i32_13 : i32
    %c0_i32_14 = arith.constant 0 : i32
    %c31_i32_15 = arith.constant 31 : i32
    %28 = arith.maxsi %c0_i32_14, %26 : i32
    %29 = arith.minsi %c31_i32_15, %28 : i32
    %c32_i32_16 = arith.constant 32 : i32
    %30 = arith.subi %26, %c32_i32_16 : i32
    %c0_i32_17 = arith.constant 0 : i32
    %c7_i32_18 = arith.constant 7 : i32
    %31 = arith.maxsi %c0_i32_17, %30 : i32
    %32 = arith.minsi %c7_i32_18, %31 : i32
    %33 = arith.index_cast %29 : i32 to index
    %c0_19 = arith.constant 0 : index
    %34 = vector.load %arg3[%33, %c0_19] : memref<32x128xf32, #tpu.memory_space<vmem>>, vector<1x128xf32>
    %c0_20 = arith.constant 0 : index
    %35 = arith.index_cast %32 : i32 to index
    %c0_21 = arith.constant 0 : index
    %36 = vector.load %arg4[%c0_20, %35, %c0_21] : memref<1x8x128xf32, #tpu.memory_space<vmem>>, vector<1x1x128xf32>
    %37 = vector.shape_cast %36 : vector<1x1x128xf32> to vector<1x128xf32>
    %38 = arith.select %27, %37, %34 : vector<1x128xf32>
    %39 = arith.select %27, %4, %3 : vector<1x128xf32>
    %40 = arith.select %27, %6, %5 : vector<1x128xf32>
    %c2_i32 = arith.constant 2 : i32
    %41 = arith.addi %2, %c2_i32 : i32
    %42 = arith.index_cast %41 : i32 to index
    %43 = memref.load %arg2[%42] : memref<16xi32, #tpu.memory_space<smem>>
    %c32_i32_22 = arith.constant 32 : i32
    %44 = arith.cmpi sge, %43, %c32_i32_22 : i32
    %c0_i32_23 = arith.constant 0 : i32
    %c31_i32_24 = arith.constant 31 : i32
    %45 = arith.maxsi %c0_i32_23, %43 : i32
    %46 = arith.minsi %c31_i32_24, %45 : i32
    %c32_i32_25 = arith.constant 32 : i32
    %47 = arith.subi %43, %c32_i32_25 : i32
    %c0_i32_26 = arith.constant 0 : i32
    %c7_i32_27 = arith.constant 7 : i32
    %48 = arith.maxsi %c0_i32_26, %47 : i32
    %49 = arith.minsi %c7_i32_27, %48 : i32
    %50 = arith.index_cast %46 : i32 to index
    %c0_28 = arith.constant 0 : index
    %51 = vector.load %arg3[%50, %c0_28] : memref<32x128xf32, #tpu.memory_space<vmem>>, vector<1x128xf32>
    %c0_29 = arith.constant 0 : index
    %52 = arith.index_cast %49 : i32 to index
    %c0_30 = arith.constant 0 : index
    %53 = vector.load %arg4[%c0_29, %52, %c0_30] : memref<1x8x128xf32, #tpu.memory_space<vmem>>, vector<1x1x128xf32>
    %54 = vector.shape_cast %53 : vector<1x1x128xf32> to vector<1x128xf32>
    %55 = arith.select %44, %54, %51 : vector<1x128xf32>
    %56 = arith.select %44, %4, %3 : vector<1x128xf32>
    %57 = arith.select %44, %6, %5 : vector<1x128xf32>
    %c3_i32 = arith.constant 3 : i32
    %58 = arith.addi %2, %c3_i32 : i32
    %59 = arith.index_cast %58 : i32 to index
    %60 = memref.load %arg2[%59] : memref<16xi32, #tpu.memory_space<smem>>
    %c32_i32_31 = arith.constant 32 : i32
    %61 = arith.cmpi sge, %60, %c32_i32_31 : i32
    %c0_i32_32 = arith.constant 0 : i32
    %c31_i32_33 = arith.constant 31 : i32
    %62 = arith.maxsi %c0_i32_32, %60 : i32
    %63 = arith.minsi %c31_i32_33, %62 : i32
    %c32_i32_34 = arith.constant 32 : i32
    %64 = arith.subi %60, %c32_i32_34 : i32
    %c0_i32_35 = arith.constant 0 : i32
    %c7_i32_36 = arith.constant 7 : i32
    %65 = arith.maxsi %c0_i32_35, %64 : i32
    %66 = arith.minsi %c7_i32_36, %65 : i32
    %67 = arith.index_cast %63 : i32 to index
    %c0_37 = arith.constant 0 : index
    %68 = vector.load %arg3[%67, %c0_37] : memref<32x128xf32, #tpu.memory_space<vmem>>, vector<1x128xf32>
    %c0_38 = arith.constant 0 : index
    %69 = arith.index_cast %66 : i32 to index
    %c0_39 = arith.constant 0 : index
    %70 = vector.load %arg4[%c0_38, %69, %c0_39] : memref<1x8x128xf32, #tpu.memory_space<vmem>>, vector<1x1x128xf32>
    %71 = vector.shape_cast %70 : vector<1x1x128xf32> to vector<1x128xf32>
    %72 = arith.select %61, %71, %68 : vector<1x128xf32>
    %73 = arith.select %61, %4, %3 : vector<1x128xf32>
    %74 = arith.select %61, %6, %5 : vector<1x128xf32>
    %c4_i32 = arith.constant 4 : i32
    %75 = arith.addi %2, %c4_i32 : i32
    %76 = arith.index_cast %75 : i32 to index
    %77 = memref.load %arg2[%76] : memref<16xi32, #tpu.memory_space<smem>>
    %c32_i32_40 = arith.constant 32 : i32
    %78 = arith.cmpi sge, %77, %c32_i32_40 : i32
    %c0_i32_41 = arith.constant 0 : i32
    %c31_i32_42 = arith.constant 31 : i32
    %79 = arith.maxsi %c0_i32_41, %77 : i32
    %80 = arith.minsi %c31_i32_42, %79 : i32
    %c32_i32_43 = arith.constant 32 : i32
    %81 = arith.subi %77, %c32_i32_43 : i32
    %c0_i32_44 = arith.constant 0 : i32
    %c7_i32_45 = arith.constant 7 : i32
    %82 = arith.maxsi %c0_i32_44, %81 : i32
    %83 = arith.minsi %c7_i32_45, %82 : i32
    %84 = arith.index_cast %80 : i32 to index
    %c0_46 = arith.constant 0 : index
    %85 = vector.load %arg3[%84, %c0_46] : memref<32x128xf32, #tpu.memory_space<vmem>>, vector<1x128xf32>
    %c0_47 = arith.constant 0 : index
    %86 = arith.index_cast %83 : i32 to index
    %c0_48 = arith.constant 0 : index
    %87 = vector.load %arg4[%c0_47, %86, %c0_48] : memref<1x8x128xf32, #tpu.memory_space<vmem>>, vector<1x1x128xf32>
    %88 = vector.shape_cast %87 : vector<1x1x128xf32> to vector<1x128xf32>
    %89 = arith.select %78, %88, %85 : vector<1x128xf32>
    %90 = arith.select %78, %4, %3 : vector<1x128xf32>
    %91 = arith.select %78, %6, %5 : vector<1x128xf32>
    %c5_i32 = arith.constant 5 : i32
    %92 = arith.addi %2, %c5_i32 : i32
    %93 = arith.index_cast %92 : i32 to index
    %94 = memref.load %arg2[%93] : memref<16xi32, #tpu.memory_space<smem>>
    %c32_i32_49 = arith.constant 32 : i32
    %95 = arith.cmpi sge, %94, %c32_i32_49 : i32
    %c0_i32_50 = arith.constant 0 : i32
    %c31_i32_51 = arith.constant 31 : i32
    %96 = arith.maxsi %c0_i32_50, %94 : i32
    %97 = arith.minsi %c31_i32_51, %96 : i32
    %c32_i32_52 = arith.constant 32 : i32
    %98 = arith.subi %94, %c32_i32_52 : i32
    %c0_i32_53 = arith.constant 0 : i32
    %c7_i32_54 = arith.constant 7 : i32
    %99 = arith.maxsi %c0_i32_53, %98 : i32
    %100 = arith.minsi %c7_i32_54, %99 : i32
    %101 = arith.index_cast %97 : i32 to index
    %c0_55 = arith.constant 0 : index
    %102 = vector.load %arg3[%101, %c0_55] : memref<32x128xf32, #tpu.memory_space<vmem>>, vector<1x128xf32>
    %c0_56 = arith.constant 0 : index
    %103 = arith.index_cast %100 : i32 to index
    %c0_57 = arith.constant 0 : index
    %104 = vector.load %arg4[%c0_56, %103, %c0_57] : memref<1x8x128xf32, #tpu.memory_space<vmem>>, vector<1x1x128xf32>
    %105 = vector.shape_cast %104 : vector<1x1x128xf32> to vector<1x128xf32>
    %106 = arith.select %95, %105, %102 : vector<1x128xf32>
    %107 = arith.select %95, %4, %3 : vector<1x128xf32>
    %108 = arith.select %95, %6, %5 : vector<1x128xf32>
    %c6_i32 = arith.constant 6 : i32
    %109 = arith.addi %2, %c6_i32 : i32
    %110 = arith.index_cast %109 : i32 to index
    %111 = memref.load %arg2[%110] : memref<16xi32, #tpu.memory_space<smem>>
    %c32_i32_58 = arith.constant 32 : i32
    %112 = arith.cmpi sge, %111, %c32_i32_58 : i32
    %c0_i32_59 = arith.constant 0 : i32
    %c31_i32_60 = arith.constant 31 : i32
    %113 = arith.maxsi %c0_i32_59, %111 : i32
    %114 = arith.minsi %c31_i32_60, %113 : i32
    %c32_i32_61 = arith.constant 32 : i32
    %115 = arith.subi %111, %c32_i32_61 : i32
    %c0_i32_62 = arith.constant 0 : i32
    %c7_i32_63 = arith.constant 7 : i32
    %116 = arith.maxsi %c0_i32_62, %115 : i32
    %117 = arith.minsi %c7_i32_63, %116 : i32
    %118 = arith.index_cast %114 : i32 to index
    %c0_64 = arith.constant 0 : index
    %119 = vector.load %arg3[%118, %c0_64] : memref<32x128xf32, #tpu.memory_space<vmem>>, vector<1x128xf32>
    %c0_65 = arith.constant 0 : index
    %120 = arith.index_cast %117 : i32 to index
    %c0_66 = arith.constant 0 : index
    %121 = vector.load %arg4[%c0_65, %120, %c0_66] : memref<1x8x128xf32, #tpu.memory_space<vmem>>, vector<1x1x128xf32>
    %122 = vector.shape_cast %121 : vector<1x1x128xf32> to vector<1x128xf32>
    %123 = arith.select %112, %122, %119 : vector<1x128xf32>
    %124 = arith.select %112, %4, %3 : vector<1x128xf32>
    %125 = arith.select %112, %6, %5 : vector<1x128xf32>
    %c7_i32_67 = arith.constant 7 : i32
    %126 = arith.addi %2, %c7_i32_67 : i32
    %127 = arith.index_cast %126 : i32 to index
    %128 = memref.load %arg2[%127] : memref<16xi32, #tpu.memory_space<smem>>
    %c32_i32_68 = arith.constant 32 : i32
    %129 = arith.cmpi sge, %128, %c32_i32_68 : i32
    %c0_i32_69 = arith.constant 0 : i32
    %c31_i32_70 = arith.constant 31 : i32
    %130 = arith.maxsi %c0_i32_69, %128 : i32
    %131 = arith.minsi %c31_i32_70, %130 : i32
    %c32_i32_71 = arith.constant 32 : i32
    %132 = arith.subi %128, %c32_i32_71 : i32
    %c0_i32_72 = arith.constant 0 : i32
    %c7_i32_73 = arith.constant 7 : i32
    %133 = arith.maxsi %c0_i32_72, %132 : i32
    %134 = arith.minsi %c7_i32_73, %133 : i32
    %135 = arith.index_cast %131 : i32 to index
    %c0_74 = arith.constant 0 : index
    %136 = vector.load %arg3[%135, %c0_74] : memref<32x128xf32, #tpu.memory_space<vmem>>, vector<1x128xf32>
    %c0_75 = arith.constant 0 : index
    %137 = arith.index_cast %134 : i32 to index
    %c0_76 = arith.constant 0 : index
    %138 = vector.load %arg4[%c0_75, %137, %c0_76] : memref<1x8x128xf32, #tpu.memory_space<vmem>>, vector<1x1x128xf32>
    %139 = vector.shape_cast %138 : vector<1x1x128xf32> to vector<1x128xf32>
    %140 = arith.select %129, %139, %136 : vector<1x128xf32>
    %141 = arith.select %129, %4, %3 : vector<1x128xf32>
    %142 = arith.select %129, %6, %5 : vector<1x128xf32>
    %143 = tpu.concatenate %21, %38, %55, %72, %89, %106, %123, %140 in 0 : vector<1x128xf32>, vector<1x128xf32>, vector<1x128xf32>, vector<1x128xf32>, vector<1x128xf32>, vector<1x128xf32>, vector<1x128xf32>, vector<1x128xf32> -> vector<8x128xf32>
    %144 = tpu.concatenate %22, %39, %56, %73, %90, %107, %124, %141 in 0 : vector<1x128xf32>, vector<1x128xf32>, vector<1x128xf32>, vector<1x128xf32>, vector<1x128xf32>, vector<1x128xf32>, vector<1x128xf32>, vector<1x128xf32> -> vector<8x128xf32>
    %145 = tpu.concatenate %23, %40, %57, %74, %91, %108, %125, %142 in 0 : vector<1x128xf32>, vector<1x128xf32>, vector<1x128xf32>, vector<1x128xf32>, vector<1x128xf32>, vector<1x128xf32>, vector<1x128xf32>, vector<1x128xf32> -> vector<8x128xf32>
    %cst = arith.constant dense<0.000000e+00> : vector<8xf32>
    %146 = vector.multi_reduction <add>, %143, %cst [1] : vector<8x128xf32> to vector<8xf32>
    %147 = vector.shape_cast %146 : vector<8xf32> to vector<8x1xf32>
    %cst_77 = arith.constant 1.280000e+02 : f32
    %148 = vector.broadcast %cst_77 : f32 to vector<8x1xf32>
    %149 = arith.divf %147, %148 : vector<8x1xf32>
    %150 = vector.broadcast %149 : vector<8x1xf32> to vector<8x128xf32>
    %151 = arith.subf %143, %150 : vector<8x128xf32>
    %152 = arith.mulf %151, %151 : vector<8x128xf32>
    %cst_78 = arith.constant dense<0.000000e+00> : vector<8xf32>
    %153 = vector.multi_reduction <add>, %152, %cst_78 [1] : vector<8x128xf32> to vector<8xf32>
    %154 = vector.shape_cast %153 : vector<8xf32> to vector<8x1xf32>
    %cst_79 = arith.constant 1.280000e+02 : f32
    %155 = vector.broadcast %cst_79 : f32 to vector<8x1xf32>
    %156 = arith.divf %154, %155 : vector<8x1xf32>
    %157 = vector.broadcast %149 : vector<8x1xf32> to vector<8x128xf32>
    %158 = arith.subf %143, %157 : vector<8x128xf32>
    %cst_80 = arith.constant 9.99999974E-6 : f32
    %159 = vector.broadcast %cst_80 : f32 to vector<8x1xf32>
    %160 = arith.addf %156, %159 : vector<8x1xf32>
    %161 = math.rsqrt %160 : vector<8x1xf32>
    %162 = vector.broadcast %161 : vector<8x1xf32> to vector<8x128xf32>
    %163 = arith.mulf %158, %162 : vector<8x128xf32>
    %164 = arith.mulf %163, %144 : vector<8x128xf32>
    %165 = arith.addf %164, %145 : vector<8x128xf32>
    %c0_81 = arith.constant 0 : index
    %c0_82 = arith.constant 0 : index
    %166 = vector.load %arg5[%c0_81, %c0_82] : memref<8x128xf32, #tpu.memory_space<vmem>>, vector<8x128xf32>
    %167 = arith.addf %165, %166 : vector<8x128xf32>
    %c0_83 = arith.constant 0 : index
    %c0_84 = arith.constant 0 : index
    %c0_85 = arith.constant 0 : index
    %168 = vector.load %arg8[%c0_83, %c0_84, %c0_85] : memref<1x8x128xf32, #tpu.memory_space<vmem>>, vector<1x8x128xf32>
    %169 = vector.shape_cast %168 : vector<1x8x128xf32> to vector<8x128xf32>
    %170 = vector.shape_cast %167 : vector<8x128xf32> to vector<1x8x128xf32>
    tpu.vector_store %arg8[%c0_83, %c0_84, %c0_85], %170 {strides = array<i32>} : memref<1x8x128xf32, #tpu.memory_space<vmem>>, vector<1x8x128xf32>,
    return
  }
  func.func @transform_0(%arg0: i32, %arg1: i32, %arg2: memref<16xi32, #tpu.memory_space<smem>>) -> (i32, i32) {
    %c0_i32 = arith.constant 0 : i32
    %c0_i32_0 = arith.constant 0 : i32
    %c0_i32_1 = arith.constant 0 : i32
    return %c0_i32, %c0_i32_0 : i32, i32
  }
  func.func @transform_1(%arg0: i32, %arg1: i32, %arg2: memref<16xi32, #tpu.memory_space<smem>>) -> (i32, i32, i32) {
    %c0_i32 = arith.constant 0 : i32
    %c0_i32_0 = arith.constant 0 : i32
    %c0_i32_1 = arith.constant 0 : i32
    return %arg0, %c0_i32, %c0_i32_0 : i32, i32, i32
  }
  func.func @transform_2(%arg0: i32, %arg1: i32, %arg2: memref<16xi32, #tpu.memory_space<smem>>) -> (i32, i32) {
    %c0_i32 = arith.constant 0 : i32
    %c0_i32_0 = arith.constant 0 : i32
    return %arg1, %c0_i32 : i32, i32
  }
  func.func @transform_3(%arg0: i32, %arg1: i32, %arg2: memref<16xi32, #tpu.memory_space<smem>>) -> (i32, i32) {
    %c0_i32 = arith.constant 0 : i32
    %c0_i32_0 = arith.constant 0 : i32
    %c0_i32_1 = arith.constant 0 : i32
    return %c0_i32, %c0_i32_0 : i32, i32
  }
  func.func @transform_4(%arg0: i32, %arg1: i32, %arg2: memref<16xi32, #tpu.memory_space<smem>>) -> (i32, i32) {
    %c0_i32 = arith.constant 0 : i32
    %c0_i32_0 = arith.constant 0 : i32
    %c0_i32_1 = arith.constant 0 : i32
    return %c0_i32, %c0_i32_0 : i32, i32
  }
  func.func @transform_5(%arg0: i32, %arg1: i32, %arg2: memref<16xi32, #tpu.memory_space<smem>>) -> (i32, i32, i32) {
    %c0_i32 = arith.constant 0 : i32
    %c0_i32_0 = arith.constant 0 : i32
    return %arg0, %arg1, %c0_i32 : i32, i32, i32
  }
}

</mosaic_0001>

<llo_original>
// kernel: prev_embedding_forward.1
$region0: #{prev_embedding_forward.1}
  #allocation0 [shape = 'u32[]', space=smem, size = 0x4, offset = 0x4, fixed_abs, tag = 'smem constant byte address 0x4 - core index']
  #allocation1 [shape = 'u32[144,128]{1,0:T(1,128)}', space=vmem, size = 0x12000, scoped, tag = 'internal scratch']
  #allocation2 [shape = 's32[1]{0}', space=sflag, size = 0x4, scoped, tag = 'scoped memory for prev_embedding_forward.1']
  #allocation3 [shape = 'u8[512]{0}', space=smem, size = 0x200, scoped, tag = 'prefetched SMEM operand 0']
  %s0 = inlined_call_operand.vmem [shape: s32[16], index: 0, kind: input, shape index: {}]
  %s1 = inlined_call_operand.vmem [shape: f32[32,128], index: 1, kind: input, shape index: {}]
  %s2 = inlined_call_operand.vmem [shape: f32[2,8,128], index: 2, kind: input, shape index: {}]
  %s3 = inlined_call_operand.vmem [shape: f32[8,128], index: 3, kind: input, shape index: {}]
  %s4 = inlined_call_operand.vmem [shape: f32[2,128], index: 4, kind: input, shape index: {}]
  %s5 = inlined_call_operand.vmem [shape: f32[2,128], index: 5, kind: input, shape index: {}]
  %s6 = inlined_call_operand.hbm [shape: f32[2,8,128], index: 6, kind: output, shape index: {}]
  %s7 = sld [smem:[#allocation0]]
  $region53: #{prev_embedding_forward.1} parent=0
    _
  %s9 = ssub.s32 1, %s7
  %s10 = scalar_select 0, %s9, %s7
  %s11 = sshll.u32 %s0, 4
  %s12 = int_to_ptr.vmem [resolvable:$true] %s11
  %14 = dma.vmem_to_smem %s12, 16, [#allocation3], [#allocation2]
  %15 = dma.done [#allocation2], 16
  %16 = sfence
  $region1: #{prev_embedding_forward.1} parent=0
    #allocation4 [shape = 'u8[8192]{0}', space=vmem, size = 0x2000, scoped, tag = 'output window, operand 0']
    #allocation5 [shape = 's32[2]{0}', space=sflag, size = 0x8, scoped, tag = 'scoped memory for prev_embedding_forward.1']
    %17 = vsyncpa [#allocation5], 0
    %s18 = scalar_lea.sflag [#allocation5], 1
    %19 = vsyncpa %s18, 0
    loop: start=0, step=1, limit=4
    $region2: #{prev_embedding_forward.1} parent=1 // loop_pre_header
      _
    $region3: #{prev_embedding_forward.1} parent=1 // loop_header
      %s21 = sphi 0, %s25
      %p22 = scmp.ge.s32.totalorder %s21, 4
      %s28 = sphi 0, %s40
      %s29 = sphi 0, %s36
      %s30 = sphi 0, %s28
      %s31 = sphi 0, %s29
      %s32 = sphi 0, %s30
      %s33 = sphi 0, %s31
      %s41 = sphi 0, %s41
      %s43 = sphi 0, %s41
      %s44 = sphi 0, %s43
      %s58 = sphi 0, %s44
      %s64 = sphi 0, %s66
      %s67 = sphi 0, %s64
      %s68 = sphi 0, %s67
      %s84 = sphi 0, %s68
      %s90 = sphi 0, %s92
      %s93 = sphi 0, %s90
      %s94 = sphi 0, %s93
      %s110 = sphi 0, %s94
      %s114 = sphi 0, %s114
      %s116 = sphi 0, %s114
      %s117 = sphi 0, %s116
      %s131 = sphi 0, %s117
      %s135 = sphi 0, %s135
      %s137 = sphi 0, %s135
      %s138 = sphi 0, %s137
      %s152 = sphi 0, %s138
      %s160 = sphi 0, %s162
      %s163 = sphi 0, %s160
      %s164 = sphi 0, %s163
      %s180 = sphi 0, %s164
    $region4: #{prev_embedding_forward.1} parent=1 // loop_header_branch
      %24 = sbr.rel (%p22) target = $region8
    $region5: #{prev_embedding_forward.1} parent=1 // loop_body
      %s26 = ssub.s32 %s21, 1
      %s27 = ssub.s32 %s21, 2
      %s34 = sadd.s32 1, %s29
      %p35 = scmp.ge.s32.totalorder %s34, 1
      %s36 = scalar_select %p35, 0, %s34
      %s37 = sadd.s32 1, %s28
      %s38 = scalar_select %p35, %s37, %s28
      %p39 = scmp.ge.s32.totalorder %s38, 2
      %s40 = scalar_select %p39, 0, %s38
      %s42 = sadd.s32 %s41, 1
      %p45 = scmp.eq.s32.totalorder %s21, 1
      %p46 = scmp.ne.s32.totalorder %s41, %s43
      %p47 = scmp.eq.s32.totalorder %s21, 0
      %p48 = por %p46, %p47
      %p49 = scmp.ne.s32.totalorder %s41, %s43
      %p50 = scmp.eq.s32.totalorder %s26, 1
      %p51 = por %p49, %p50
      %p52 = scmp.ne.s32.totalorder %s43, %s44
      %p53 = scmp.eq.s32.totalorder %s26, 0
      %p54 = por %p52, %p53
      %p55 = scmp.ne.s32.totalorder %s43, %s44
      %p56 = scmp.eq.s32.totalorder %s27, 1
      %p57 = por %p55, %p56
      %p59 = scmp.ne.s32.totalorder %s44, %s58
      %p60 = scmp.eq.s32.totalorder %s27, 0
      %p61 = por %p59, %p60
      %s62 = ssub.s32 %s28, %s40
      %p63 = scmp.eq.s32.totalorder %s62, 0
      %s65 = sadd.s32 %s64, 1
      %s66 = scalar_select %p63, %s64, %s65
      %p69 = pneg %p63
      %p70 = scmp.eq.s32.totalorder %s21, 1
      %p71 = por %p69, %p70
      %p72 = scmp.ne.s32.totalorder %s64, %s67
      %p73 = scmp.eq.s32.totalorder %s21, 0
      %p74 = por %p72, %p73
      %p75 = scmp.ne.s32.totalorder %s64, %s67
      %p76 = scmp.eq.s32.totalorder %s26, 1
      %p77 = por %p75, %p76
      %p78 = scmp.ne.s32.totalorder %s67, %s68
      %p79 = scmp.eq.s32.totalorder %s26, 0
      %p80 = por %p78, %p79
      %p81 = scmp.ne.s32.totalorder %s67, %s68
      %p82 = scmp.eq.s32.totalorder %s27, 1
      %p83 = por %p81, %p82
      %p85 = scmp.ne.s32.totalorder %s68, %s84
      %p86 = scmp.eq.s32.totalorder %s27, 0
      %p87 = por %p85, %p86
      %s88 = ssub.s32 %s29, %s36
      %p89 = scmp.eq.s32.totalorder %s88, 0
      %s91 = sadd.s32 %s90, 1
      %s92 = scalar_select %p89, %s90, %s91
      %p95 = pneg %p89
      %p96 = scmp.eq.s32.totalorder %s21, 1
      %p97 = por %p95, %p96
      %p98 = scmp.ne.s32.totalorder %s90, %s93
      %p99 = scmp.eq.s32.totalorder %s21, 0
      %p100 = por %p98, %p99
      %p101 = scmp.ne.s32.totalorder %s90, %s93
      %p102 = scmp.eq.s32.totalorder %s26, 1
      %p103 = por %p101, %p102
      %p104 = scmp.ne.s32.totalorder %s93, %s94
      %p105 = scmp.eq.s32.totalorder %s26, 0
      %p106 = por %p104, %p105
      %p107 = scmp.ne.s32.totalorder %s93, %s94
      %p108 = scmp.eq.s32.totalorder %s27, 1
      %p109 = por %p107, %p108
      %p111 = scmp.ne.s32.totalorder %s94, %s110
      %p112 = scmp.eq.s32.totalorder %s27, 0
      %p113 = por %p111, %p112
      %s115 = sadd.s32 %s114, 1
      %p118 = scmp.eq.s32.totalorder %s21, 1
      %p119 = scmp.ne.s32.totalorder %s114, %s116
      %p120 = scmp.eq.s32.totalorder %s21, 0
      %p121 = por %p119, %p120
      %p122 = scmp.ne.s32.totalorder %s114, %s116
      %p123 = scmp.eq.s32.totalorder %s26, 1
      %p124 = por %p122, %p123
      %p125 = scmp.ne.s32.totalorder %s116, %s117
      %p126 = scmp.eq.s32.totalorder %s26, 0
      %p127 = por %p125, %p126
      %p128 = scmp.ne.s32.totalorder %s116, %s117
      %p129 = scmp.eq.s32.totalorder %s27, 1
      %p130 = por %p128, %p129
      %p132 = scmp.ne.s32.totalorder %s117, %s131
      %p133 = scmp.eq.s32.totalorder %s27, 0
      %p134 = por %p132, %p133
      %s136 = sadd.s32 %s135, 1
      %p139 = scmp.eq.s32.totalorder %s21, 1
      %p140 = scmp.ne.s32.totalorder %s135, %s137
      %p141 = scmp.eq.s32.totalorder %s21, 0
      %p142 = por %p140, %p141
      %p143 = scmp.ne.s32.totalorder %s135, %s137
      %p144 = scmp.eq.s32.totalorder %s26, 1
      %p145 = por %p143, %p144
      %p146 = scmp.ne.s32.totalorder %s137, %s138
      %p147 = scmp.eq.s32.totalorder %s26, 0
      %p148 = por %p146, %p147
      %p149 = scmp.ne.s32.totalorder %s137, %s138
      %p150 = scmp.eq.s32.totalorder %s27, 1
      %p151 = por %p149, %p150
      %p153 = scmp.ne.s32.totalorder %s138, %s152
      %p154 = scmp.eq.s32.totalorder %s27, 0
      %p155 = por %p153, %p154
      %s156 = ssub.s32 %s28, %s40
      %s157 = ssub.s32 %s29, %s36
      %s158 = sor.u32 %s156, %s157
      %p159 = scmp.eq.s32.totalorder %s158, 0
      %s161 = sadd.s32 %s160, 1
      %s162 = scalar_select %p159, %s160, %s161
      %p165 = pneg %p159
      %p166 = scmp.eq.s32.totalorder %s21, 1
      %p167 = por %p165, %p166
      %p168 = scmp.ne.s32.totalorder %s160, %s163
      %p169 = scmp.eq.s32.totalorder %s21, 0
      %p170 = por %p168, %p169
      %p171 = scmp.ne.s32.totalorder %s160, %s163
      %p172 = scmp.eq.s32.totalorder %s26, 1
      %p173 = por %p171, %p172
      %p174 = scmp.ne.s32.totalorder %s163, %s164
      %p175 = scmp.eq.s32.totalorder %s26, 0
      %p176 = por %p174, %p175
      %p177 = scmp.ne.s32.totalorder %s163, %s164
      %p178 = scmp.eq.s32.totalorder %s27, 1
      %p179 = por %p177, %p178
      %p181 = scmp.ne.s32.totalorder %s164, %s180
      %p182 = scmp.eq.s32.totalorder %s27, 0
      %p183 = por %p181, %p182
      %p184 = scmp.le.s32.totalorder 1, %s21
      %p185 = scmp.lt.s32.totalorder %s21, 3
      %p186 = pnand %p184, %p185
      %p187 = pneg %p186
      // Predicated region
      $region9: #{prev_embedding_forward.1} parent=5 // pred_check
        _
      $region10: #{prev_embedding_forward.1} parent=5 // pred_check_branch
        %189 = sbr.rel (%p186) target = $region12
      $region11: #{prev_embedding_forward.1} parent=5 // pred_region
        %s190 = ssub.s32 %s21, 1
        // Predicated region
        $region13: #{prev_embedding_forward.1} parent=11 // pred_check
          %p191 = pneg %p54
        $region14: #{prev_embedding_forward.1} parent=11 // pred_check_branch
          %193 = sbr.rel (%p191) target = $region16
        $region15: #{prev_embedding_forward.1} parent=11 // pred_region
          _
        $region16: #{prev_embedding_forward.1} parent=11 // pred_fallthru
          _
        // Predicated region
        $region17: #{prev_embedding_forward.1} parent=11 // pred_check
          %p194 = pneg %p106
        $region18: #{prev_embedding_forward.1} parent=11 // pred_check_branch
          %196 = sbr.rel (%p194) target = $region20
        $region19: #{prev_embedding_forward.1} parent=11 // pred_region
          %p197 = scmp.lt.s32.totalorder %s31, 0
          %s198 = scalar_select %p197, %s31, 0
          %s199 = smul.addr %s198, 8
          %s200 = scalar_lea.vmem %s3, %s199
        $region20: #{prev_embedding_forward.1} parent=11 // pred_fallthru
          _
        // Predicated region
        $region21: #{prev_embedding_forward.1} parent=11 // pred_check
          %p201 = pneg %p127
        $region22: #{prev_embedding_forward.1} parent=11 // pred_check_branch
          %203 = sbr.rel (%p201) target = $region24
        $region23: #{prev_embedding_forward.1} parent=11 // pred_region
          _
        $region24: #{prev_embedding_forward.1} parent=11 // pred_fallthru
          _
        // Predicated region
        $region25: #{prev_embedding_forward.1} parent=11 // pred_check
          %p204 = pneg %p148
        $region26: #{prev_embedding_forward.1} parent=11 // pred_check_branch
          %206 = sbr.rel (%p204) target = $region28
        $region27: #{prev_embedding_forward.1} parent=11 // pred_region
          _
        $region28: #{prev_embedding_forward.1} parent=11 // pred_fallthru
          _
      $region12: #{prev_embedding_forward.1} parent=5 // pred_fallthru
        _
      %p207 = scmp.lt.s32.totalorder %s21, 2
      // Predicated region
      $region29: #{prev_embedding_forward.1} parent=5 // pred_check
        %p208 = pneg %p207
      $region30: #{prev_embedding_forward.1} parent=5 // pred_check_branch
        %210 = sbr.rel (%p208) target = $region32
      $region31: #{prev_embedding_forward.1} parent=5 // pred_region
        // Predicated region
        $region33: #{prev_embedding_forward.1} parent=31 // pred_check
          %p211 = pneg %p74
        $region34: #{prev_embedding_forward.1} parent=31 // pred_check_branch
          %213 = sbr.rel (%p211) target = $region36
        $region35: #{prev_embedding_forward.1} parent=31 // pred_region
          %p214 = scmp.lt.s32.totalorder %s28, 1
          %s215 = scalar_select %p214, %s28, 1
          %s216 = smul.addr %s215, 8
          %s217 = scalar_lea.vmem %s2, %s216
        $region36: #{prev_embedding_forward.1} parent=31 // pred_fallthru
          _
      $region32: #{prev_embedding_forward.1} parent=5 // pred_fallthru
        _
      %p218 = scmp.le.s32.totalorder 1, %s21
      %p219 = scmp.lt.s32.totalorder %s21, 3
      %p220 = pnand %p218, %p219
      %p221 = pneg %p220
      // Predicated region
      $region37: #{prev_embedding_forward.1} parent=5 // pred_check
        _
      $region38: #{prev_embedding_forward.1} parent=5 // pred_check_branch
        %223 = sbr.rel (%p220) target = $region40
      $region39: #{prev_embedding_forward.1} parent=5 // pred_region
        %s224 = ssub.s32 %s21, 1
        %p225 = pneg %p54
        %p226 = pneg %p51
        %p227 = scmp.lt.s32.totalorder %s30, 1
        %s228 = scalar_select %p227, %s30, 1
        %s229 = smul.addr %s228, 8
        %s230 = scalar_lea.vmem %s2, %s229
        %p231 = pneg %p80
        %p232 = pneg %p77
        %p233 = scmp.lt.s32.totalorder %s31, 0
        %s234 = scalar_select %p233, %s31, 0
        %s235 = smul.addr %s234, 8
        %s236 = scalar_lea.vmem %s3, %s235
        %p237 = pneg %p106
        %p238 = pneg %p103
        %p239 = pneg %p127
        %p240 = pneg %p124
        %p241 = pneg %p148
        %p242 = pneg %p145
        %p243 = pneg %p176
        %p244 = pneg %p173
        %s245 = sand.u32 %s163, 1
        %s246 = scalar_lea.sflag [#allocation5], %s245
        %s247 = sand.u32 %s163, 1
        %s248 = smul.addr %s247, 8
        %s249 = scalar_lea.vmem [#allocation4], %s248
        %p250 = scmp.lt.s32.totalorder %s30, 1
        %s251 = scalar_select %p250, %s30, 1
        %s252 = smul.addr %s251, 8
        %s253 = scalar_lea.vmem %s2, %s252
        %p254 = scmp.lt.s32.totalorder %s31, 0
        %s255 = scalar_select %p254, %s31, 0
        %s256 = smul.addr %s255, 8
        %s257 = scalar_lea.vmem %s3, %s256
        %s258 = smul.u32 %s30, 8
        %s259 = smul.u32 %s31, 8
        %s260 = sadd.s32 %s258, %s259
        %v261 = vld [vmem:[%s4] sm:$0x1]
        %v262 = vld [vmem:[%s4 + $0x1] sm:$0x1]
        %v263 = vld [vmem:[%s5] sm:$0x1]
        %v264 = vld [vmem:[%s5 + $0x1] sm:$0x1]
        %s265 = sld [smem:[#allocation3 + %s260]]
        %p266 = scmp.ge.s32.totalorder %s265, 32
        %p267 = scmp.gt.s32.totalorder %s265, 0
        %s268 = scalar_select %p267, %s265, 0
        %p269 = scmp.lt.s32.totalorder %s268, 31
        %s270 = scalar_select %p269, %s268, 31
        %s271 = ssub.s32 %s265, 32
        %p272 = scmp.gt.s32.totalorder %s271, 0
        %s273 = scalar_select %p272, %s271, 0
        %p274 = scmp.lt.s32.totalorder %s273, 7
        %s275 = scalar_select %p274, %s273, 7
        %s276 = scalar_lea.vmem %s1, %s270
        %v277 = vld [vmem:[%s276] sm:$0x1]
        %s278 = scalar_lea.vmem %s253, %s275
        %v279 = vld [vmem:[%s278] sm:$0x1]
        %s280 = scalar_select %p266, 1, 0
        %v281 = vstv %s280
        %vm282 = vcmp.eq.s32.totalorder %v281, 1
        %v283 = vsel %vm282, %v279, %v277
        %v284 = vsel %vm282, %v262, %v261
        %v285 = vsel %vm282, %v264, %v263
        %s286 = sadd.s32 %s260, 1
        %s287 = sld [smem:[#allocation3 + %s286]]
        %p288 = scmp.ge.s32.totalorder %s287, 32
        %p289 = scmp.gt.s32.totalorder %s287, 0
        %s290 = scalar_select %p289, %s287, 0
        %p291 = scmp.lt.s32.totalorder %s290, 31
        %s292 = scalar_select %p291, %s290, 31
        %s293 = ssub.s32 %s287, 32
        %p294 = scmp.gt.s32.totalorder %s293, 0
        %s295 = scalar_select %p294, %s293, 0
        %p296 = scmp.lt.s32.totalorder %s295, 7
        %s297 = scalar_select %p296, %s295, 7
        %s298 = scalar_lea.vmem %s1, %s292
        %v299 = vld [vmem:[%s298] sm:$0x1]
        %s300 = scalar_lea.vmem %s253, %s297
        %v301 = vld [vmem:[%s300] sm:$0x1]
        %s302 = scalar_select %p288, 1, 0
        %v303 = vstv %s302
        %vm304 = vcmp.eq.s32.totalorder %v303, 1
        %v305 = vsel %vm304, %v301, %v299
        %v306 = vsel %vm304, %v262, %v261
        %v307 = vsel %vm304, %v264, %v263
        %s308 = sadd.s32 %s260, 2
        %s309 = sld [smem:[#allocation3 + %s308]]
        %p310 = scmp.ge.s32.totalorder %s309, 32
        %p311 = scmp.gt.s32.totalorder %s309, 0
        %s312 = scalar_select %p311, %s309, 0
        %p313 = scmp.lt.s32.totalorder %s312, 31
        %s314 = scalar_select %p313, %s312, 31
        %s315 = ssub.s32 %s309, 32
        %p316 = scmp.gt.s32.totalorder %s315, 0
        %s317 = scalar_select %p316, %s315, 0
        %p318 = scmp.lt.s32.totalorder %s317, 7
        %s319 = scalar_select %p318, %s317, 7
        %s320 = scalar_lea.vmem %s1, %s314
        %v321 = vld [vmem:[%s320] sm:$0x1]
        %s322 = scalar_lea.vmem %s253, %s319
        %v323 = vld [vmem:[%s322] sm:$0x1]
        %s324 = scalar_select %p310, 1, 0
        %v325 = vstv %s324
        %vm326 = vcmp.eq.s32.totalorder %v325, 1
        %v327 = vsel %vm326, %v323, %v321
        %v328 = vsel %vm326, %v262, %v261
        %v329 = vsel %vm326, %v264, %v263
        %s330 = sadd.s32 %s260, 3
        %s331 = sld [smem:[#allocation3 + %s330]]
        %p332 = scmp.ge.s32.totalorder %s331, 32
        %p333 = scmp.gt.s32.totalorder %s331, 0
        %s334 = scalar_select %p333, %s331, 0
        %p335 = scmp.lt.s32.totalorder %s334, 31
        %s336 = scalar_select %p335, %s334, 31
        %s337 = ssub.s32 %s331, 32
        %p338 = scmp.gt.s32.totalorder %s337, 0
        %s339 = scalar_select %p338, %s337, 0
        %p340 = scmp.lt.s32.totalorder %s339, 7
        %s341 = scalar_select %p340, %s339, 7
        %s342 = scalar_lea.vmem %s1, %s336
        %v343 = vld [vmem:[%s342] sm:$0x1]
        %s344 = scalar_lea.vmem %s253, %s341
        %v345 = vld [vmem:[%s344] sm:$0x1]
        %s346 = scalar_select %p332, 1, 0
        %v347 = vstv %s346
        %vm348 = vcmp.eq.s32.totalorder %v347, 1
        %v349 = vsel %vm348, %v345, %v343
        %v350 = vsel %vm348, %v262, %v261
        %v351 = vsel %vm348, %v264, %v263
        %s352 = sadd.s32 %s260, 4
        %s353 = sld [smem:[#allocation3 + %s352]]
        %p354 = scmp.ge.s32.totalorder %s353, 32
        %p355 = scmp.gt.s32.totalorder %s353, 0
        %s356 = scalar_select %p355, %s353, 0
        %p357 = scmp.lt.s32.totalorder %s356, 31
        %s358 = scalar_select %p357, %s356, 31
        %s359 = ssub.s32 %s353, 32
        %p360 = scmp.gt.s32.totalorder %s359, 0
        %s361 = scalar_select %p360, %s359, 0
        %p362 = scmp.lt.s32.totalorder %s361, 7
        %s363 = scalar_select %p362, %s361, 7
        %s364 = scalar_lea.vmem %s1, %s358
        %v365 = vld [vmem:[%s364] sm:$0x1]
        %s366 = scalar_lea.vmem %s253, %s363
        %v367 = vld [vmem:[%s366] sm:$0x1]
        %s368 = scalar_select %p354, 1, 0
        %v369 = vstv %s368
        %vm370 = vcmp.eq.s32.totalorder %v369, 1
        %v371 = vsel %vm370, %v367, %v365
        %v372 = vsel %vm370, %v262, %v261
        %v373 = vsel %vm370, %v264, %v263
        %s374 = sadd.s32 %s260, 5
        %s375 = sld [smem:[#allocation3 + %s374]]
        %p376 = scmp.ge.s32.totalorder %s375, 32
        %p377 = scmp.gt.s32.totalorder %s375, 0
        %s378 = scalar_select %p377, %s375, 0
        %p379 = scmp.lt.s32.totalorder %s378, 31
        %s380 = scalar_select %p379, %s378, 31
        %s381 = ssub.s32 %s375, 32
        %p382 = scmp.gt.s32.totalorder %s381, 0
        %s383 = scalar_select %p382, %s381, 0
        %p384 = scmp.lt.s32.totalorder %s383, 7
        %s385 = scalar_select %p384, %s383, 7
        %s386 = scalar_lea.vmem %s1, %s380
        %v387 = vld [vmem:[%s386] sm:$0x1]
        %s388 = scalar_lea.vmem %s253, %s385
        %v389 = vld [vmem:[%s388] sm:$0x1]
        %s390 = scalar_select %p376, 1, 0
        %v391 = vstv %s390
        %vm392 = vcmp.eq.s32.totalorder %v391, 1
        %v393 = vsel %vm392, %v389, %v387
        %v394 = vsel %vm392, %v262, %v261
        %v395 = vsel %vm392, %v264, %v263
        %s396 = sadd.s32 %s260, 6
        %s397 = sld [smem:[#allocation3 + %s396]]
        %p398 = scmp.ge.s32.totalorder %s397, 32
        %p399 = scmp.gt.s32.totalorder %s397, 0
        %s400 = scalar_select %p399, %s397, 0
        %p401 = scmp.lt.s32.totalorder %s400, 31
        %s402 = scalar_select %p401, %s400, 31
        %s403 = ssub.s32 %s397, 32
        %p404 = scmp.gt.s32.totalorder %s403, 0
        %s405 = scalar_select %p404, %s403, 0
        %p406 = scmp.lt.s32.totalorder %s405, 7
        %s407 = scalar_select %p406, %s405, 7
        %s408 = scalar_lea.vmem %s1, %s402
        %v409 = vld [vmem:[%s408] sm:$0x1]
        %s410 = scalar_lea.vmem %s253, %s407
        %v411 = vld [vmem:[%s410] sm:$0x1]
        %s412 = scalar_select %p398, 1, 0
        %v413 = vstv %s412
        %vm414 = vcmp.eq.s32.totalorder %v413, 1
        %v415 = vsel %vm414, %v411, %v409
        %v416 = vsel %vm414, %v262, %v261
        %v417 = vsel %vm414, %v264, %v263
        %s418 = sadd.s32 %s260, 7
        %s419 = sld [smem:[#allocation3 + %s418]]
        %p420 = scmp.ge.s32.totalorder %s419, 32
        %p421 = scmp.gt.s32.totalorder %s419, 0
        %s422 = scalar_select %p421, %s419, 0
        %p423 = scmp.lt.s32.totalorder %s422, 31
        %s424 = scalar_select %p423, %s422, 31
        %s425 = ssub.s32 %s419, 32
        %p426 = scmp.gt.s32.totalorder %s425, 0
        %s427 = scalar_select %p426, %s425, 0
        %p428 = scmp.lt.s32.totalorder %s427, 7
        %s429 = scalar_select %p428, %s427, 7
        %s430 = scalar_lea.vmem %s1, %s424
        %v431 = vld [vmem:[%s430] sm:$0x1]
        %s432 = scalar_lea.vmem %s253, %s429
        %v433 = vld [vmem:[%s432] sm:$0x1]
        %s434 = scalar_select %p420, 1, 0
        %v435 = vstv %s434
        %vm436 = vcmp.eq.s32.totalorder %v435, 1
        %v437 = vsel %vm436, %v433, %v431
        %v438 = vsel %vm436, %v262, %v261
        %v439 = vsel %vm436, %v264, %v263
        %v441 = vrot.slane %v305, 7
        %v444 = vrot.slane %v327, 6
        %v447 = vrot.slane %v349, 5
        %v450 = vrot.slane %v371, 4
        %v453 = vrot.slane %v393, 3
        %v456 = vrot.slane %v415, 2
        %v459 = vrot.slane %v437, 1
        %vm461 = vcmask 1040384
        %v462 = vsel %vm461, %v283, %v441
        %vm463 = vcmask 1041408
        %v464 = vsel %vm463, %v462, %v444
        %vm465 = vcmask 1042432
        %v466 = vsel %vm465, %v464, %v447
        %vm467 = vcmask 1043456
        %v468 = vsel %vm467, %v466, %v450
        %vm469 = vcmask 1044480
        %v470 = vsel %vm469, %v468, %v453
        %vm471 = vcmask 1045504
        %v472 = vsel %vm471, %v470, %v456
        %vm473 = vcmask 1046528
        %v474 = vsel %vm473, %v472, %v459
        %v476 = vrot.slane %v306, 7
        %v479 = vrot.slane %v328, 6
        %v482 = vrot.slane %v350, 5
        %v485 = vrot.slane %v372, 4
        %v488 = vrot.slane %v394, 3
        %v491 = vrot.slane %v416, 2
        %v494 = vrot.slane %v438, 1
        %v496 = vsel %vm461, %v284, %v476
        %v497 = vsel %vm463, %v496, %v479
        %v498 = vsel %vm465, %v497, %v482
        %v499 = vsel %vm467, %v498, %v485
        %v500 = vsel %vm469, %v499, %v488
        %v501 = vsel %vm471, %v500, %v491
        %v502 = vsel %vm473, %v501, %v494
        %v504 = vrot.slane %v307, 7
        %v507 = vrot.slane %v329, 6
        %v510 = vrot.slane %v351, 5
        %v513 = vrot.slane %v373, 4
        %v516 = vrot.slane %v395, 3
        %v519 = vrot.slane %v417, 2
        %v522 = vrot.slane %v439, 1
        %v524 = vsel %vm461, %v285, %v504
        %v525 = vsel %vm463, %v524, %v507
        %v526 = vsel %vm465, %v525, %v510
        %v527 = vsel %vm467, %v526, %v513
        %v528 = vsel %vm469, %v527, %v516
        %v529 = vsel %vm471, %v528, %v519
        %v530 = vsel %vm473, %v529, %v522
        %531 = vadd.xlane.f32.xlu0 %v474
        %v532 = vpop.xlane.xlu0 %531
        %v533 = vrcp.pop 128.0
        %v534 = vmul.f32 %v532, %v533
        %v535 = vsub.f32 %v474, %v534
        %v536 = vmul.f32 %v535, %v535
        %537 = vadd.xlane.f32.xlu0 %v536
        %v538 = vpop.xlane.xlu0 %537
        %v539 = vmul.f32 %v538, %v533
        %v540 = vadd.f32 %v539, 1e-05
        %v541 = vrsqrt.pop %v540
        %v542 = vmul.f32 %v535, %v541
        %v543 = vmul.f32 %v542, %v502
        %v544 = vadd.f32 %v543, %v530
        %v545 = vld [vmem:[%s257] sm:$0xff]
        %v546 = vadd.f32 %v544, %v545
        %547 = vst [vmem:[%s249] sm:$0xff] %v546
        %s548 = sand.u32 %s163, 1
        %s549 = scalar_lea.sflag [#allocation5], %s548
        %s550 = sand.u32 %s163, 1
        %s551 = smul.addr %s550, 8
        %s552 = scalar_lea.vmem [#allocation4], %s551
        // Predicated region
        $region41: #{prev_embedding_forward.1} parent=39 // pred_check
          %p553 = pneg %p173
        $region42: #{prev_embedding_forward.1} parent=39 // pred_check_branch
          %555 = sbr.rel (%p553) target = $region44
        $region43: #{prev_embedding_forward.1} parent=39 // pred_region
          %s557 = ssub.s32 128, 128
          %558 = vsyncadd %s549, %s557
          %s559 = sadd.s32 %s31, %s30
          %s560 = smul.addr %s559, 128
          %s561 = scalar_lea.hbm %s6, %s560
          %s563 = sshll.u32 %s552, 4
          %s564 = int_to_ptr.vmem [resolvable:$true] %s563
          %566 = dma.vmem_to_hbm [thread:$0]  %s564, 128, %s561, %s549
        $region44: #{prev_embedding_forward.1} parent=39 // pred_fallthru
          _
      $region40: #{prev_embedding_forward.1} parent=5 // pred_fallthru
        _
      %p567 = scmp.le.s32.totalorder 2, %s21
      // Predicated region
      $region45: #{prev_embedding_forward.1} parent=5 // pred_check
        %p568 = pneg %p567
      $region46: #{prev_embedding_forward.1} parent=5 // pred_check_branch
        %570 = sbr.rel (%p568) target = $region48
      $region47: #{prev_embedding_forward.1} parent=5 // pred_region
        %s571 = ssub.s32 %s21, 2
        // Predicated region
        $region49: #{prev_embedding_forward.1} parent=47 // pred_check
          %p572 = pneg %p179
        $region50: #{prev_embedding_forward.1} parent=47 // pred_check_branch
          %574 = sbr.rel (%p572) target = $region52
        $region51: #{prev_embedding_forward.1} parent=47 // pred_region
          %s575 = sand.u32 %s164, 1
          %s576 = scalar_lea.sflag [#allocation5], %s575
          %s577 = sand.u32 %s164, 1
          %s578 = smul.addr %s577, 8
          %s579 = scalar_lea.vmem [#allocation4], %s578
          %580 = dma.done %s576, 128
        $region52: #{prev_embedding_forward.1} parent=47 // pred_fallthru
          _
      $region48: #{prev_embedding_forward.1} parent=5 // pred_fallthru
        _
    $region6: #{prev_embedding_forward.1} parent=1 // loop_footer
      %s25 = sadd.s32 1, %s21
    $region7: #{prev_embedding_forward.1} parent=1 // loop_footer_branch
      %20 = sbr.rel target = $region3
    $region8: #{prev_embedding_forward.1} parent=1 // loop_exit
      _
    %581 = vsyncpa [#allocation5], 1
    %s582 = scalar_lea.sflag [#allocation5], 1
    %583 = vsyncpa %s582, 1

</llo_original>
